<compile_context>
chip_gen: v5e
topology: v5e:2x2
jax: 0.10.0
libtpu: 0.0.40
codegen_flags: <defaults>
</compile_context>

<pallas_src>
import jax
import jax.numpy as jnp
import numpy as np
from jax.experimental import pallas as pl
from jax.experimental.pallas import tpu as pltpu

EPS = 1e-5  # PyTorch LayerNorm default


def _dft_tables(n):
    """cos/sin tables of the size-n DFT matrix (exp(-2*pi*i*m*n/N) convention)."""
    idx = np.arange(n)
    ang = 2.0 * np.pi * np.outer(idx, idx) / n
    return np.cos(ang).astype(np.float32), np.sin(ang).astype(np.float32)


def fourier_mix_kernel(x_ref, cds_ref, cln_ref, g_ref, b_ref, o_ref):
    nb, L, D = x_ref.shape

    # ---- Stage 1: hidden-dim DFT, all NB*L rows in a single wide-M matmul. ----
    xf = x_ref[...].reshape(nb * L, D)             # leading-dim collapse (cheap)
    # cds = [C_D | S_D]  ->  w = [x @ C_D | x @ S_D]   (nb*L, 2D)
    w = jnp.dot(xf, cds_ref[...], preferred_element_type=jnp.float32)

    cln = cln_ref[...]                             # (L, 2L) = [C_L | -S_L]
    gamma = g_ref[...]                             # (1, D)
    beta = b_ref[...]                              # (1, D)

    # ---- Stage 2: seq-dim DFT (real part) + LayerNorm, per batch row. ----
    # TODO(synk): for very small L, stack batches along lanes and do one
    # (L, 2L) x (2L, nb*D) matmul instead of this unrolled loop; the required
    # in-kernel relayout is not worth it at moderate/large L.
    for b in range(nb):
        wb = w[b * L:(b + 1) * L, :]                          # (L, 2D) static slice
        v = jnp.concatenate([wb[:, :D], wb[:, D:]], axis=0)   # (2L, D) = [xr_b; xs_b]
        y = jnp.dot(cln, v, preferred_element_type=jnp.float32)  # (L, D)

        # LayerNorm over d_model: one-pass stats, biased variance, eps=1e-5.
        m1 = jnp.mean(y, axis=-1, keepdims=True)
        m2 = jnp.mean(y * y, axis=-1, keepdims=True)
        var = jnp.maximum(m2 - m1 * m1, 0.0)
        inv = jax.lax.rsqrt(var + EPS)
        o_ref[b] = ((y - m1) * inv) * gamma + beta


def _pick_batch_tile(B, L, D, target_rows=256, max_nb=64, vmem_budget=8 << 20):
    """Largest divisor NB of B with NB*L >= target_rows if possible, while the
    double-buffered x/out blocks stay within a modest VMEM budget."""
    nb = 1
    for cand in range(1, B + 1):
        if B % cand:
            continue
        if cand > max_nb:
            break
        # x block + out block, each double-buffered by the pipeline (4 copies).
        if cand > 1 and cand * L * D * 4 * 4 > vmem_budget:
            break
        nb = cand
        if cand * L >= target_rows:
            break
    return nb


def fourier_mix(x, gamma, beta):
    """x: (B, L, D). Returns (out, None), like the PyTorch FourierMix.forward."""
    B, L, D = x.shape
    x = x.astype(jnp.float32)

    cd, sd = _dft_tables(D)
    cl, sl = _dft_tables(L)
    cds = jnp.asarray(np.concatenate([cd, sd], axis=1))      # (D, 2D) = [C_D |  S_D]
    cln = jnp.asarray(np.concatenate([cl, -sl], axis=1))     # (L, 2L) = [C_L | -S_L]
    gamma2 = jnp.asarray(gamma, jnp.float32).reshape(1, D)
    beta2 = jnp.asarray(beta, jnp.float32).reshape(1, D)

    nb = _pick_batch_tile(B, L, D)
    grid = (B // nb,)

    # Constant operands: identical block every grid step -> single buffer.
    const = dict(pipeline_mode=pl.Buffered(1))

    out = pl.pallas_call(
        fourier_mix_kernel,
        out_shape=jax.ShapeDtypeStruct((B, L, D), jnp.float32),
        grid=grid,
        in_specs=[
            pl.BlockSpec((nb, L, D), lambda i: (i, 0, 0)),          # x (batch tile)
            pl.BlockSpec((D, 2 * D), lambda i: (0, 0), **const),    # [C_D | S_D]
            pl.BlockSpec((L, 2 * L), lambda i: (0, 0), **const),    # [C_L | -S_L]
            pl.BlockSpec((1, D), lambda i: (0, 0), **const),        # gamma
            pl.BlockSpec((1, D), lambda i: (0, 0), **const),        # beta
        ],
        out_specs=pl.BlockSpec((nb, L, D), lambda i: (i, 0, 0)),
        compiler_params=pltpu.CompilerParams(
            dimension_semantics=("parallel",),
            # Above the 16/32 MiB scoped defaults; still within physical VMEM
            # on v5e/v6e/v7x for the table sizes this kernel targets.
            vmem_limit_bytes=64 << 20,
        ),
    )(x, cds, cln, gamma2, beta2)
    return out, None


def _reference(x, gamma, beta):
    """Pure-JAX reference mirroring the PyTorch forward."""
    y = jnp.real(jnp.fft.fft(jnp.fft.fft(x, axis=2), axis=1)).astype(jnp.float32)
    mean = jnp.mean(y, axis=-1, keepdims=True)
    var = jnp.mean((y - mean) ** 2, axis=-1, keepdims=True)
    return (y - mean) / jnp.sqrt(var + EPS) * gamma + beta


if __name__ == "__main__":
    B, L, D = 2, 8, 32  # batch, seq, d_model
    key = jax.random.PRNGKey(0)
    x = jax.random.normal(key, (B, L, D), dtype=jnp.float32)

    # LayerNorm params: PyTorch default init (weight=1, bias=0), deterministic.
    gamma = jnp.ones((D,), dtype=jnp.float32)
    beta = jnp.zeros((D,), dtype=jnp.float32)

    out, attn = fourier_mix(x, gamma, beta)
    out = jax.block_until_ready(out)
    assert attn is None

    ref = _reference(x, gamma, beta)
    np.testing.assert_allclose(np.asarray(out), np.asarray(ref), rtol=1e-4, atol=1e-4)
    print("KERNEL_OK")
</pallas_src>

<mosaic_0001>
module attributes {stable_mosaic.version = 11 : i64} {
  func.func @fourier_mix_kernel(%arg0: i32, %arg1: memref<2x8x32xf32, #tpu.memory_space<vmem>>, %arg2: memref<32x64xf32, #tpu.memory_space<vmem>>, %arg3: memref<8x16xf32, #tpu.memory_space<vmem>>, %arg4: memref<1x32xf32, #tpu.memory_space<vmem>>, %arg5: memref<1x32xf32, #tpu.memory_space<vmem>>, %arg6: memref<2x8x32xf32, #tpu.memory_space<vmem>>) attributes {dimension_semantics = [#tpu.dimension_semantics<parallel>], iteration_bounds = array<i64: 1>, scalar_prefetch = 0 : i64, scratch_operands = 0 : i64, tpu.core_type = #tpu.core_type<tc>, window_params = [{transform_indices = @transform_0, window_bounds = array<i64: 2, 8, 32>}, {pipeline_mode = #tpu.pipeline_mode<synchronous>, transform_indices = @transform_1, window_bounds = array<i64: 32, 64>}, {pipeline_mode = #tpu.pipeline_mode<synchronous>, transform_indices = @transform_2, window_bounds = array<i64: 8, 16>}, {pipeline_mode = #tpu.pipeline_mode<synchronous>, transform_indices = @transform_3, window_bounds = array<i64: 1, 32>}, {pipeline_mode = #tpu.pipeline_mode<synchronous>, transform_indices = @transform_4, window_bounds = array<i64: 1, 32>}, {transform_indices = @transform_5, window_bounds = array<i64: 2, 8, 32>}]} {
    %c0 = arith.constant 0 : index
    %c0_0 = arith.constant 0 : index
    %c0_1 = arith.constant 0 : index
    %0 = vector.load %arg1[%c0, %c0_0, %c0_1] : memref<2x8x32xf32, #tpu.memory_space<vmem>>, vector<2x8x32xf32>
    %1 = vector.shape_cast %0 : vector<2x8x32xf32> to vector<16x32xf32>
    %c0_2 = arith.constant 0 : index
    %c0_3 = arith.constant 0 : index
    %2 = vector.load %arg2[%c0_2, %c0_3] : memref<32x64xf32, #tpu.memory_space<vmem>>, vector<32x64xf32>
    %cst = arith.constant dense<0.000000e+00> : vector<16x64xf32>
    %3 = tpu.matmul %1, %2, %cst {dimension_numbers = #tpu.dot_dimension_numbers<[1], [0], [0], [1], [0, 0, 1, 1], [], []>} : vector<16x32xf32>, vector<32x64xf32>, vector<16x64xf32> -> vector<16x64xf32>
    %c0_4 = arith.constant 0 : index
    %c0_5 = arith.constant 0 : index
    %4 = vector.load %arg3[%c0_4, %c0_5] : memref<8x16xf32, #tpu.memory_space<vmem>>, vector<8x16xf32>
    %c0_6 = arith.constant 0 : index
    %c0_7 = arith.constant 0 : index
    %5 = vector.load %arg4[%c0_6, %c0_7] : memref<1x32xf32, #tpu.memory_space<vmem>>, vector<1x32xf32>
    %c0_8 = arith.constant 0 : index
    %c0_9 = arith.constant 0 : index
    %6 = vector.load %arg5[%c0_8, %c0_9] : memref<1x32xf32, #tpu.memory_space<vmem>>, vector<1x32xf32>
    %7 = vector.extract_strided_slice %3 {offsets = [0, 0], sizes = [8, 64], strides = [1, 1]} : vector<16x64xf32> to vector<8x64xf32>
    %8 = vector.extract_strided_slice %7 {offsets = [0, 0], sizes = [8, 32], strides = [1, 1]} : vector<8x64xf32> to vector<8x32xf32>
    %9 = vector.extract_strided_slice %7 {offsets = [0, 32], sizes = [8, 32], strides = [1, 1]} : vector<8x64xf32> to vector<8x32xf32>
    %10 = tpu.concatenate %8, %9 in 0 : vector<8x32xf32>, vector<8x32xf32> -> vector<16x32xf32>
    %cst_10 = arith.constant dense<0.000000e+00> : vector<8x32xf32>
    %11 = tpu.matmul %4, %10, %cst_10 {dimension_numbers = #tpu.dot_dimension_numbers<[1], [0], [0], [1], [0, 0, 1, 1], [], []>} : vector<8x16xf32>, vector<16x32xf32>, vector<8x32xf32> -> vector<8x32xf32>
    %cst_11 = arith.constant dense<0.000000e+00> : vector<8xf32>
    %12 = vector.multi_reduction <add>, %11, %cst_11 [1] : vector<8x32xf32> to vector<8xf32>
    %13 = vector.shape_cast %12 : vector<8xf32> to vector<8x1xf32>
    %cst_12 = arith.constant 3.200000e+01 : f32
    %14 = vector.broadcast %cst_12 : f32 to vector<8x1xf32>
    %15 = arith.divf %13, %14 : vector<8x1xf32>
    %16 = arith.mulf %11, %11 : vector<8x32xf32>
    %cst_13 = arith.constant dense<0.000000e+00> : vector<8xf32>
    %17 = vector.multi_reduction <add>, %16, %cst_13 [1] : vector<8x32xf32> to vector<8xf32>
    %18 = vector.shape_cast %17 : vector<8xf32> to vector<8x1xf32>
    %cst_14 = arith.constant 3.200000e+01 : f32
    %19 = vector.broadcast %cst_14 : f32 to vector<8x1xf32>
    %20 = arith.divf %18, %19 : vector<8x1xf32>
    %21 = arith.mulf %15, %15 : vector<8x1xf32>
    %22 = arith.subf %20, %21 : vector<8x1xf32>
    %cst_15 = arith.constant 0.000000e+00 : f32
    %23 = vector.broadcast %cst_15 : f32 to vector<8x1xf32>
    %24 = arith.maximumf %22, %23 : vector<8x1xf32>
    %cst_16 = arith.constant 9.99999974E-6 : f32
    %25 = vector.broadcast %cst_16 : f32 to vector<8x1xf32>
    %26 = arith.addf %24, %25 : vector<8x1xf32>
    %27 = math.rsqrt %26 : vector<8x1xf32>
    %28 = vector.broadcast %15 : vector<8x1xf32> to vector<8x32xf32>
    %29 = arith.subf %11, %28 : vector<8x32xf32>
    %30 = vector.broadcast %27 : vector<8x1xf32> to vector<8x32xf32>
    %31 = arith.mulf %29, %30 : vector<8x32xf32>
    %32 = vector.broadcast %5 : vector<1x32xf32> to vector<8x32xf32>
    %33 = arith.mulf %31, %32 : vector<8x32xf32>
    %34 = vector.broadcast %6 : vector<1x32xf32> to vector<8x32xf32>
    %35 = arith.addf %33, %34 : vector<8x32xf32>
    %c0_17 = arith.constant 0 : index
    %c0_18 = arith.constant 0 : index
    %c0_19 = arith.constant 0 : index
    %36 = vector.load %arg6[%c0_17, %c0_18, %c0_19] : memref<2x8x32xf32, #tpu.memory_space<vmem>>, vector<1x8x32xf32>
    %37 = vector.shape_cast %36 : vector<1x8x32xf32> to vector<8x32xf32>
    %38 = vector.shape_cast %35 : vector<8x32xf32> to vector<1x8x32xf32>
    tpu.vector_store %arg6[%c0_17, %c0_18, %c0_19], %38 {strides = array<i32>} : memref<2x8x32xf32, #tpu.memory_space<vmem>>, vector<1x8x32xf32>,
    %39 = vector.extract_strided_slice %3 {offsets = [8, 0], sizes = [8, 64], strides = [1, 1]} : vector<16x64xf32> to vector<8x64xf32>
    %40 = vector.extract_strided_slice %39 {offsets = [0, 0], sizes = [8, 32], strides = [1, 1]} : vector<8x64xf32> to vector<8x32xf32>
    %41 = vector.extract_strided_slice %39 {offsets = [0, 32], sizes = [8, 32], strides = [1, 1]} : vector<8x64xf32> to vector<8x32xf32>
    %42 = tpu.concatenate %40, %41 in 0 : vector<8x32xf32>, vector<8x32xf32> -> vector<16x32xf32>
    %cst_20 = arith.constant dense<0.000000e+00> : vector<8x32xf32>
    %43 = tpu.matmul %4, %42, %cst_20 {dimension_numbers = #tpu.dot_dimension_numbers<[1], [0], [0], [1], [0, 0, 1, 1], [], []>} : vector<8x16xf32>, vector<16x32xf32>, vector<8x32xf32> -> vector<8x32xf32>
    %cst_21 = arith.constant dense<0.000000e+00> : vector<8xf32>
    %44 = vector.multi_reduction <add>, %43, %cst_21 [1] : vector<8x32xf32> to vector<8xf32>
    %45 = vector.shape_cast %44 : vector<8xf32> to vector<8x1xf32>
    %cst_22 = arith.constant 3.200000e+01 : f32
    %46 = vector.broadcast %cst_22 : f32 to vector<8x1xf32>
    %47 = arith.divf %45, %46 : vector<8x1xf32>
    %48 = arith.mulf %43, %43 : vector<8x32xf32>
    %cst_23 = arith.constant dense<0.000000e+00> : vector<8xf32>
    %49 = vector.multi_reduction <add>, %48, %cst_23 [1] : vector<8x32xf32> to vector<8xf32>
    %50 = vector.shape_cast %49 : vector<8xf32> to vector<8x1xf32>
    %cst_24 = arith.constant 3.200000e+01 : f32
    %51 = vector.broadcast %cst_24 : f32 to vector<8x1xf32>
    %52 = arith.divf %50, %51 : vector<8x1xf32>
    %53 = arith.mulf %47, %47 : vector<8x1xf32>
    %54 = arith.subf %52, %53 : vector<8x1xf32>
    %cst_25 = arith.constant 0.000000e+00 : f32
    %55 = vector.broadcast %cst_25 : f32 to vector<8x1xf32>
    %56 = arith.maximumf %54, %55 : vector<8x1xf32>
    %cst_26 = arith.constant 9.99999974E-6 : f32
    %57 = vector.broadcast %cst_26 : f32 to vector<8x1xf32>
    %58 = arith.addf %56, %57 : vector<8x1xf32>
    %59 = math.rsqrt %58 : vector<8x1xf32>
    %60 = vector.broadcast %47 : vector<8x1xf32> to vector<8x32xf32>
    %61 = arith.subf %43, %60 : vector<8x32xf32>
    %62 = vector.broadcast %59 : vector<8x1xf32> to vector<8x32xf32>
    %63 = arith.mulf %61, %62 : vector<8x32xf32>
    %64 = vector.broadcast %5 : vector<1x32xf32> to vector<8x32xf32>
    %65 = arith.mulf %63, %64 : vector<8x32xf32>
    %66 = vector.broadcast %6 : vector<1x32xf32> to vector<8x32xf32>
    %67 = arith.addf %65, %66 : vector<8x32xf32>
    %c1 = arith.constant 1 : index
    %c0_27 = arith.constant 0 : index
    %c0_28 = arith.constant 0 : index
    %68 = vector.load %arg6[%c1, %c0_27, %c0_28] : memref<2x8x32xf32, #tpu.memory_space<vmem>>, vector<1x8x32xf32>
    %69 = vector.shape_cast %68 : vector<1x8x32xf32> to vector<8x32xf32>
    %70 = vector.shape_cast %67 : vector<8x32xf32> to vector<1x8x32xf32>
    tpu.vector_store %arg6[%c1, %c0_27, %c0_28], %70 {strides = array<i32>} : memref<2x8x32xf32, #tpu.memory_space<vmem>>, vector<1x8x32xf32>,
    return
  }
  func.func @transform_0(%arg0: i32) -> (i32, i32, i32) {
    %c0_i32 = arith.constant 0 : i32
    %c0_i32_0 = arith.constant 0 : i32
    %c0_i32_1 = arith.constant 0 : i32
    return %arg0, %c0_i32, %c0_i32_0 : i32, i32, i32
  }
  func.func @transform_1(%arg0: i32) -> (i32, i32) {
    %c0_i32 = arith.constant 0 : i32
    %c0_i32_0 = arith.constant 0 : i32
    %c0_i32_1 = arith.constant 0 : i32
    return %c0_i32, %c0_i32_0 : i32, i32
  }
  func.func @transform_2(%arg0: i32) -> (i32, i32) {
    %c0_i32 = arith.constant 0 : i32
    %c0_i32_0 = arith.constant 0 : i32
    %c0_i32_1 = arith.constant 0 : i32
    return %c0_i32, %c0_i32_0 : i32, i32
  }
  func.func @transform_3(%arg0: i32) -> (i32, i32) {
    %c0_i32 = arith.constant 0 : i32
    %c0_i32_0 = arith.constant 0 : i32
    %c0_i32_1 = arith.constant 0 : i32
    return %c0_i32, %c0_i32_0 : i32, i32
  }
  func.func @transform_4(%arg0: i32) -> (i32, i32) {
    %c0_i32 = arith.constant 0 : i32
    %c0_i32_0 = arith.constant 0 : i32
    %c0_i32_1 = arith.constant 0 : i32
    return %c0_i32, %c0_i32_0 : i32, i32
  }
  func.func @transform_5(%arg0: i32) -> (i32, i32, i32) {
    %c0_i32 = arith.constant 0 : i32
    %c0_i32_0 = arith.constant 0 : i32
    %c0_i32_1 = arith.constant 0 : i32
    return %arg0, %c0_i32, %c0_i32_0 : i32, i32, i32
  }
}

</mosaic_0001>

<llo_original>
// kernel: tpu_custom_call.1
$region0: #{tpu_custom_call.1}
  #allocation0 [shape = 'u32[]', space=smem, size = 0x4, offset = 0x4, fixed_abs, tag = 'smem constant byte address 0x4 - core index']
  #allocation1 [shape = 'u32[72,128]{1,0:T(1,128)}', space=vmem, size = 0x9000, scoped, tag = 'internal scratch']
  %s0 = inlined_call_operand.hbm [shape: f32[2,8,32], index: 0, kind: input, shape index: {}]
  %s1 = inlined_call_operand.hbm [shape: f32[32,64], index: 1, kind: input, shape index: {}]
  %s2 = inlined_call_operand.hbm [shape: f32[8,16], index: 2, kind: input, shape index: {}]
  %s3 = inlined_call_operand.vmem [shape: f32[1,32], index: 3, kind: input, shape index: {}]
  %s4 = inlined_call_operand.vmem [shape: f32[1,32], index: 4, kind: input, shape index: {}]
  %s5 = inlined_call_operand.hbm [shape: f32[2,8,32], index: 5, kind: output, shape index: {}]
  %s6 = sld [smem:[#allocation0]]
  $region42: #{tpu_custom_call.1} parent=0
    _
  %s8 = ssub.s32 1, %s6
  %s9 = scalar_select 0, %s8, %s6
  $region1: #{tpu_custom_call.1} parent=0
    #allocation2 [shape = 'u8[8192]{0}', space=vmem, size = 0x2000, scoped, tag = 'input window, operand 0, single buffered']
    #allocation3 [shape = 's32[1]{0}', space=sflag, size = 0x4, scoped, tag = 'scoped memory for tpu_custom_call.1']
    #allocation4 [shape = 's32[1]{0}', space=sflag, size = 0x4, scoped, tag = 'scoped memory for tpu_custom_call.1']
    #allocation5 [shape = 'u8[16384]{0}', space=vmem, size = 0x4000, scoped, tag = 'input window, operand 1, single buffered']
    #allocation6 [shape = 's32[1]{0}', space=sflag, size = 0x4, scoped, tag = 'scoped memory for tpu_custom_call.1']
    #allocation7 [shape = 'u8[4096]{0}', space=vmem, size = 0x1000, scoped, tag = 'input window, operand 2, single buffered']
    #allocation8 [shape = 'u8[8192]{0}', space=vmem, size = 0x2000, scoped, tag = 'output window, operand 0, single buffered']
    %10 = vsyncpa [#allocation3], 0
    %11 = vsyncpa [#allocation6], 0
    %12 = vsyncpa [#allocation4], 0
    // Predicated region
    $region2: #{tpu_custom_call.1} parent=1 // pred_check
      _
    $region3: #{tpu_custom_call.1} parent=1 // pred_check_branch
      %14 = sbr.rel (0) target = $region5
    $region4: #{tpu_custom_call.1} parent=1 // pred_region
      %16 = vsyncadd [#allocation3], 0
      %s17 = sshll.u32 %s0, 4
      %s18 = int_to_ptr.hbm [resolvable:$true] %s17
      %s19 = sshll.u32 [#allocation2], 4
      %s20 = int_to_ptr.vmem [resolvable:$true] %s19
      %25 = dma.hbm_to_vmem [thread:$0]  %s18, 256, %s20, [#allocation3], 128, 128, 8
    $region5: #{tpu_custom_call.1} parent=1 // pred_fallthru
      _
    // Predicated region
    $region6: #{tpu_custom_call.1} parent=1 // pred_check
      _
    $region7: #{tpu_custom_call.1} parent=1 // pred_check_branch
      %27 = sbr.rel (0) target = $region9
    $region8: #{tpu_custom_call.1} parent=1 // pred_region
      %29 = vsyncadd [#allocation6], 0
      %s30 = sshll.u32 %s1, 4
      %s31 = int_to_ptr.hbm [resolvable:$true] %s30
      %s32 = sshll.u32 [#allocation5], 4
      %s33 = int_to_ptr.vmem [resolvable:$true] %s32
      %38 = dma.hbm_to_vmem [thread:$0]  %s31, 512, %s33, [#allocation6], 128, 128, 8
    $region9: #{tpu_custom_call.1} parent=1 // pred_fallthru
      _
    // Predicated region
    $region10: #{tpu_custom_call.1} parent=1 // pred_check
      _
    $region11: #{tpu_custom_call.1} parent=1 // pred_check_branch
      %40 = sbr.rel (0) target = $region13
    $region12: #{tpu_custom_call.1} parent=1 // pred_region
      %42 = vsyncadd [#allocation6], 0
      %s44 = sshll.u32 %s2, 4
      %s45 = int_to_ptr.hbm [resolvable:$true] %s44
      %s46 = sshll.u32 [#allocation7], 4
      %s47 = int_to_ptr.vmem [resolvable:$true] %s46
      %49 = dma.hbm_to_vmem [thread:$0]  %s45, 128, %s47, [#allocation6]
    $region13: #{tpu_custom_call.1} parent=1 // pred_fallthru
      _
    // Predicated region
    $region14: #{tpu_custom_call.1} parent=1 // pred_check
      _
    $region15: #{tpu_custom_call.1} parent=1 // pred_check_branch
      %51 = sbr.rel (0) target = $region17
    $region16: #{tpu_custom_call.1} parent=1 // pred_region
      _
    $region17: #{tpu_custom_call.1} parent=1 // pred_fallthru
      _
    // Predicated region
    $region18: #{tpu_custom_call.1} parent=1 // pred_check
      _
    $region19: #{tpu_custom_call.1} parent=1 // pred_check_branch
      %53 = sbr.rel (0) target = $region21
    $region20: #{tpu_custom_call.1} parent=1 // pred_region
      _
    $region21: #{tpu_custom_call.1} parent=1 // pred_fallthru
      _
    // Predicated region
    $region22: #{tpu_custom_call.1} parent=1 // pred_check
      _
    $region23: #{tpu_custom_call.1} parent=1 // pred_check_branch
      %55 = sbr.rel (0) target = $region25
    $region24: #{tpu_custom_call.1} parent=1 // pred_region
      %57 = dma.done [#allocation3], 256
    $region25: #{tpu_custom_call.1} parent=1 // pred_fallthru
      _
    // Predicated region
    $region26: #{tpu_custom_call.1} parent=1 // pred_check
      _
    $region27: #{tpu_custom_call.1} parent=1 // pred_check_branch
      %59 = sbr.rel (0) target = $region29
    $region28: #{tpu_custom_call.1} parent=1 // pred_region
      %61 = dma.done [#allocation6], 512
    $region29: #{tpu_custom_call.1} parent=1 // pred_fallthru
      _
    // Predicated region
    $region30: #{tpu_custom_call.1} parent=1 // pred_check
      _
    $region31: #{tpu_custom_call.1} parent=1 // pred_check_branch
      %63 = sbr.rel (0) target = $region33
    $region32: #{tpu_custom_call.1} parent=1 // pred_region
      %65 = dma.done [#allocation6], 128
    $region33: #{tpu_custom_call.1} parent=1 // pred_fallthru
      _
    %v66 = vld [vmem:[#allocation2] sm:$0xff]
    %v67 = vld [vmem:[#allocation2 + $0x8] sm:$0xff]
    %v68 = vld [vmem:[#allocation5] sm:$0xff]
    %v69 = vld [vmem:[#allocation5 + $0x8] sm:$0xff]
    %v70 = vld [vmem:[#allocation5 + $0x10] sm:$0xff]
    %v71 = vld [vmem:[#allocation5 + $0x18] sm:$0xff]
    %vm72 = vcmask 261120
    %v74 = vsel %vm72, %v66, 0
    %v77 = vsel %vm72, %v67, 0
    %79 = vmatpush.msra.mxu0 0.0
    %80 = vmatpush.msra.mxu0 0.0
    %81 = vmatpush.msra.mxu0 0.0
    %82 = vmatpush.msra.mxu0 0.0
    %83 = vmatpush.msra.mxu0 0.0
    %84 = vmatpush.msra.mxu0 0.0
    %85 = vmatpush.msra.mxu0 0.0
    %86 = vmatpush.msra.mxu0 0.0
    %87 = vmatpush.msra.mxu0 0.0
    %88 = vmatpush.msra.mxu0 0.0
    %89 = vmatpush.msra.mxu0 0.0
    %90 = vmatpush.msra.mxu0 0.0
    %91 = vmatpush.msra.mxu0 %v71
    %92 = vmatpush.msra.mxu0 %v70
    %93 = vmatpush.msra.mxu0 %v69
    %94 = vmatpush.msra.mxu0 %v68
    %95 = vmatmul.f32.gmra.mxu0 %v74
    %v96 = vpop.f32.mrf.mxu0
    %v97 = vadd.f32 0.0, %v96
    %98 = vmatmul.f32.gmra.mxu0 %v77
    %v99 = vpop.f32.mrf.mxu0
    %v100 = vadd.f32 0.0, %v99
    %101 = vdwg.mxu0
    %v102 = vld [vmem:[#allocation7] sm:$0xff]
    %v103 = vld [vmem:[%s3] sm:$0x1]
    %v104 = vld [vmem:[%s4] sm:$0x1]
    %106 = vrot.lane.b32.xlu0 %v97, 96
    %v107 = vpop.permute.xlu0 %106
    %vm109 = vcmask 130048
    %v111 = vsel %vm109, %v102, 0
    %113 = vmatpush.msra.mxu0 0.0
    %114 = vmatpush.msra.mxu0 0.0
    %115 = vmatpush.msra.mxu0 0.0
    %116 = vmatpush.msra.mxu0 0.0
    %117 = vmatpush.msra.mxu0 0.0
    %118 = vmatpush.msra.mxu0 0.0
    %119 = vmatpush.msra.mxu0 0.0
    %120 = vmatpush.msra.mxu0 0.0
    %121 = vmatpush.msra.mxu0 0.0
    %122 = vmatpush.msra.mxu0 0.0
    %123 = vmatpush.msra.mxu0 0.0
    %124 = vmatpush.msra.mxu0 0.0
    %125 = vmatpush.msra.mxu0 0.0
    %126 = vmatpush.msra.mxu0 0.0
    %127 = vmatpush.msra.mxu0 %v107
    %128 = vmatpush.msra.mxu0 %v97
    %129 = vmatmul.f32.gmra.mxu0 %v111
    %v130 = vpop.f32.mrf.mxu0
    %v131 = vadd.f32 0.0, %v130
    %132 = vdwg.mxu0
    %v133 = vsel %vm72, %v131, 0.0
    %134 = vadd.xlane.f32.xlu0 %v133
    %v135 = vpop.xlane.xlu0 %134
    %v136 = vrcp.pop 32.0
    %v137 = vmul.f32 32.0, %v136
    %v138 = vsub.f32 1.0, %v137
    %v139 = vmul.f32 %v136, %v138
    %v140 = vadd.f32 %v136, %v139
    %vm141 = vweird.f32 %v136
    %v142 = vsel %vm141, %v136, %v140
    %v143 = vmul.f32 %v135, %v142
    %v144 = vmul.f32 %v131, %v131
    %v145 = vsel %vm72, %v144, 0.0
    %146 = vadd.xlane.f32.xlu0 %v145
    %v147 = vpop.xlane.xlu0 %146
    %v148 = vmul.f32 %v147, %v142
    %v149 = vmul.f32 %v143, %v143
    %v150 = vsub.f32 %v148, %v149
    %v151 = vmax.f32 %v150, 0.0
    %v152 = vadd.f32 %v151, 1e-05
    %v153 = vrsqrt.pop %v152
    %v154 = vmul.f32 %v153, %v152
    %v155 = vmul.f32 %v154, %v153
    %v156 = vmul.f32 0.5, %v155
    %v157 = vsub.f32 1.5, %v156
    %v158 = vmul.f32 %v153, %v157
    %vm159 = vweird.f32 %v152
    %vm160 = vweird.f32 %v153
    %vm161 = vmor %vm159, %vm160
    %v162 = vsel %vm161, %v153, %v158
    %v163 = vsub.f32 %v131, %v143
    %v164 = vmul.f32 %v163, %v162
    %v166 = vperm.slane %v103, 0
    %v168 = vmul.f32 %v164, %v166
    %v170 = vperm.slane %v104, 0
    %v172 = vadd.f32 %v168, %v170
    %173 = vst.msk [vmem:[#allocation8] sm:$0xff] %vm72, %v172
    %175 = vrot.lane.b32.xlu0 %v100, 96
    %v176 = vpop.permute.xlu0 %175
    %178 = vmatpush.msra.mxu0 0.0
    %179 = vmatpush.msra.mxu0 0.0
    %180 = vmatpush.msra.mxu0 0.0
    %181 = vmatpush.msra.mxu0 0.0
    %182 = vmatpush.msra.mxu0 0.0
    %183 = vmatpush.msra.mxu0 0.0
    %184 = vmatpush.msra.mxu0 0.0
    %185 = vmatpush.msra.mxu0 0.0
    %186 = vmatpush.msra.mxu0 0.0
    %187 = vmatpush.msra.mxu0 0.0
    %188 = vmatpush.msra.mxu0 0.0
    %189 = vmatpush.msra.mxu0 0.0
    %190 = vmatpush.msra.mxu0 0.0
    %191 = vmatpush.msra.mxu0 0.0
    %192 = vmatpush.msra.mxu0 %v176
    %193 = vmatpush.msra.mxu0 %v100
    %194 = vmatmul.f32.gmra.mxu0 %v111
    %v195 = vpop.f32.mrf.mxu0
    %v196 = vadd.f32 0.0, %v195
    %197 = vdwg.mxu0
    %v198 = vsel %vm72, %v196, 0.0
    %199 = vadd.xlane.f32.xlu0 %v198
    %v200 = vpop.xlane.xlu0 %199
    %v201 = vmul.f32 %v200, %v142
    %v202 = vmul.f32 %v196, %v196
    %v203 = vsel %vm72, %v202, 0.0
    %204 = vadd.xlane.f32.xlu0 %v203
    %v205 = vpop.xlane.xlu0 %204
    %v206 = vmul.f32 %v205, %v142
    %v207 = vmul.f32 %v201, %v201
    %v208 = vsub.f32 %v206, %v207
    %v209 = vmax.f32 %v208, 0.0
    %v210 = vadd.f32 %v209, 1e-05
    %v211 = vrsqrt.pop %v210
    %v212 = vmul.f32 %v211, %v210
    %v213 = vmul.f32 %v212, %v211
    %v214 = vmul.f32 0.5, %v213
    %v215 = vsub.f32 1.5, %v214
    %v216 = vmul.f32 %v211, %v215
    %vm217 = vweird.f32 %v210
    %vm218 = vweird.f32 %v211
    %vm219 = vmor %vm217, %vm218
    %v220 = vsel %vm219, %v211, %v216
    %v221 = vsub.f32 %v196, %v201
    %v222 = vmul.f32 %v221, %v220
    %v223 = vmul.f32 %v222, %v166
    %v224 = vadd.f32 %v223, %v170
    %s225 = scalar_lea.vmem [#allocation8], 8
    %226 = vst.msk [vmem:[%s225] sm:$0xff] %vm72, %v224
    // Predicated region
    $region34: #{tpu_custom_call.1} parent=1 // pred_check
      _
    $region35: #{tpu_custom_call.1} parent=1 // pred_check_branch
      %228 = sbr.rel (0) target = $region37
    $region36: #{tpu_custom_call.1} parent=1 // pred_region
      %230 = vsyncadd [#allocation4], 0
      %s231 = sshll.u32 [#allocation8], 4
      %s232 = int_to_ptr.vmem [resolvable:$true] %s231
      %s233 = sshll.u32 %s5, 4
      %s234 = int_to_ptr.hbm [resolvable:$true] %s233
      %239 = dma.vmem_to_hbm [thread:$0]  %s232, 256, %s234, [#allocation4], 128, 128, 8
    $region37: #{tpu_custom_call.1} parent=1 // pred_fallthru
      _
    // Predicated region
    $region38: #{tpu_custom_call.1} parent=1 // pred_check
      _
    $region39: #{tpu_custom_call.1} parent=1 // pred_check_branch
      %241 = sbr.rel (0) target = $region41
    $region40: #{tpu_custom_call.1} parent=1 // pred_region
      %243 = dma.done [#allocation4], 256
    $region41: #{tpu_custom_call.1} parent=1 // pred_fallthru
      _
    %244 = vsyncpa [#allocation3], 1
    %245 = vsyncpa [#allocation6], 1
    %246 = vsyncpa [#allocation4], 1

</llo_original>
